<compile_context>
chip_gen: v5e
topology: v5e:2x2
jax: 0.10.0
libtpu: 0.0.40
codegen_flags: <defaults>
</compile_context>

<pallas_src>
import numpy as np
import jax
import jax.numpy as jnp
from jax.experimental import pallas as pl
from jax.experimental.pallas import tpu as pltpu


def make_cbam_kernel(inv_hw: float, inv_c: float):
    def kernel(x_ref, fcwt_ref, fcb_ref, conv_ref, o_ref):
        # x_ref / o_ref : (TB, C, HWp)    lane-dense blocks
        # fcwt_ref      : (C, C)          fc weight transposed (c_in, c_out)
        # fcb_ref       : (1, C)          fc bias
        # conv_ref      : (2, HWp, HWp)   Toeplitz spatial-conv matrices (mean / max
        #                                 channel) with KxK weights + edge masks folded in
        x = x_ref[...].astype(jnp.float32)                       # (TB, C, HWp)

        # ---- Channel attention: global avg-pool -> 1x1 conv (+bias) -> sigmoid -> scale
        pooled = jnp.sum(x, axis=-1) * inv_hw                    # (TB, C); pad lanes are 0
        logits = jnp.dot(pooled, fcwt_ref[...],
                         preferred_element_type=jnp.float32) + fcb_ref[...]
        ca = jax.nn.sigmoid(logits)                              # (TB, C)
        y = x * ca[:, :, None]                                   # (TB, C, HWp)

        # ---- Spatial attention: channel mean & max -> KxK "same" conv (MXU) -> sigmoid
        ch_mean = jnp.sum(y, axis=1) * inv_c                     # (TB, HWp)
        ch_max = jnp.max(y, axis=1)                              # (TB, HWp)
        acc = (jnp.dot(ch_mean, conv_ref[0], preferred_element_type=jnp.float32)
               + jnp.dot(ch_max, conv_ref[1], preferred_element_type=jnp.float32))
        sa = jax.nn.sigmoid(acc)                                 # (TB, HWp)

        o_ref[...] = (y * sa[:, None, :]).astype(o_ref.dtype)    # unmasked lane-dense store

    return kernel


def _build_conv_mats(sp_w, H, W, HWp):
    """Host precompute: (2, HWp, HWp) Toeplitz matrices for the KxK 'same' conv.

    mats[c][in_pos, out_pos] = sp_w[0, c, kh, kw] for every valid tap; out-of-image
    taps are simply absent (zero), which reproduces zero padding.  Rows/cols >= H*W
    (lane padding) stay zero.
    """
    K = int(sp_w.shape[-1])
    P = (K - 1) // 2
    w = np.asarray(jax.device_get(sp_w), dtype=np.float32).reshape(2, K, K)
    orow, ocol = np.meshgrid(np.arange(H), np.arange(W), indexing="ij")
    opos = (orow * W + ocol).reshape(-1)
    mats = np.zeros((2, HWp, HWp), dtype=np.float32)
    for kh in range(K):
        for kw in range(K):
            irow = orow + kh - P
            icol = ocol + kw - P
            valid = ((irow >= 0) & (irow < H) & (icol >= 0) & (icol < W)).reshape(-1)
            ipos = (irow * W + icol).reshape(-1)
            ip, op = ipos[valid], opos[valid]
            np.add.at(mats[0], (ip, op), w[0, kh, kw])
            np.add.at(mats[1], (ip, op), w[1, kh, kw])
    return jnp.asarray(mats)


def _vmem_limit_bytes() -> int:
    """Chip-aware scoped-VMEM limit: ~96 MiB on v5e/v6e (128 MiB), ~48 MiB on v7x (64 MiB)."""
    try:
        cap = int(getattr(pltpu.get_tpu_info(), "vmem_capacity_bytes", 64 * 1024 * 1024))
    except Exception:
        cap = 64 * 1024 * 1024
    return min(int(0.75 * cap), 96 * 1024 * 1024)


def _pick_tb(n: int, c: int, hwp: int, itemsize: int, budget_bytes: int) -> int:
    """Largest divisor of n whose full live set fits the block budget, with >=2 grid steps."""
    # Live bytes per image per grid step:
    #   double-buffered in+out blocks  +  f32 temporaries (x & y casts)  +  spatial planes.
    per_img = 4 * c * hwp * itemsize + 2 * c * hwp * 4 + 8 * hwp * 4
    max_tb = max(1, budget_bytes // per_img)
    if n >= 2:
        max_tb = min(max_tb, n // 2)   # >= 2 grid steps so v7x can use both TensorCores
    tb = 1
    for cand in range(1, n + 1):
        if n % cand == 0 and cand <= max_tb:
            tb = cand
    return tb


def cbam_pallas(x, fc_w, fc_b, sp_w):
    """x: (N,C,H,W); fc_w: (C,C,1,1); fc_b: (C,); sp_w: (1,2,K,K)."""
    N, C, H, W = x.shape
    HW = H * W
    HWp = ((HW + 127) // 128) * 128                      # lane-dense spatial axis

    vmem_limit = _vmem_limit_bytes()
    conv_bytes = 2 * HWp * HWp * 4
    # TODO(synk): for very large H*W (where the (2,HW,HW) Toeplitz matrix no longer fits
    # VMEM) fall back to a roll-based shift-and-accumulate spatial conv.
    block_budget = max(1 << 20, vmem_limit - conv_bytes - (4 << 20))
    TB = _pick_tb(N, C, HWp, x.dtype.itemsize, block_budget)

    x_flat = x.reshape(N, C, HW)
    if HWp != HW:
        x_flat = jnp.pad(x_flat, ((0, 0), (0, 0), (0, HWp - HW)))

    fc_wT = jnp.transpose(fc_w.reshape(C, C)).astype(jnp.float32)    # (c_in, c_out)
    fc_b2 = fc_b.reshape(1, C).astype(jnp.float32)
    conv_mats = _build_conv_mats(sp_w, H, W, HWp)                    # (2, HWp, HWp)

    kernel = make_cbam_kernel(1.0 / float(HW), 1.0 / float(C))

    out_flat = pl.pallas_call(
        kernel,
        out_shape=jax.ShapeDtypeStruct((N, C, HWp), x.dtype),
        grid_spec=pltpu.PrefetchScalarGridSpec(
            num_scalar_prefetch=0,
            grid=(N // TB,),
            in_specs=[
                pl.BlockSpec((TB, C, HWp), lambda n: (n, 0, 0)),
                pl.BlockSpec(memory_space=pltpu.MemorySpace.VMEM),   # fc weight^T (C, C)
                pl.BlockSpec(memory_space=pltpu.MemorySpace.VMEM),   # fc bias (1, C)
                pl.BlockSpec(memory_space=pltpu.MemorySpace.VMEM),   # Toeplitz conv matrices
            ],
            out_specs=pl.BlockSpec((TB, C, HWp), lambda n: (n, 0, 0)),
        ),
        compiler_params=pltpu.CompilerParams(
            dimension_semantics=("parallel",),           # batch blocks are independent
            vmem_limit_bytes=vmem_limit,
        ),
    )(x_flat, fc_wT, fc_b2, conv_mats)

    out = out_flat[:, :, :HW] if HWp != HW else out_flat
    return out.reshape(N, C, H, W)


def cbam_reference(x, fc_w, fc_b, sp_w):
    """Pure-JAX reference matching the PyTorch CBAM forward."""
    N, C, H, W = x.shape
    K = sp_w.shape[-1]
    P = (K - 1) // 2
    xf = x.astype(jnp.float32)
    pooled = jnp.mean(xf, axis=(2, 3))                                  # (N, C)
    logits = pooled @ fc_w.reshape(C, C).T + fc_b.reshape(1, C)         # (N, C)
    y = xf * jax.nn.sigmoid(logits)[:, :, None, None]
    ch_mean = jnp.mean(y, axis=1, keepdims=True)
    ch_max = jnp.max(y, axis=1, keepdims=True)
    s_in = jnp.concatenate([ch_mean, ch_max], axis=1)                   # (N, 2, H, W)
    conv = jax.lax.conv_general_dilated(
        s_in, sp_w.reshape(1, 2, K, K),
        window_strides=(1, 1), padding=[(P, P), (P, P)],
        dimension_numbers=("NCHW", "OIHW", "NCHW"))
    return (y * jax.nn.sigmoid(conv)).astype(x.dtype)


if __name__ == "__main__":
    N, C, H, W, K = 2, 4, 16, 16, 7
    key = jax.random.PRNGKey(0)
    kx, kw1, kb1, kw2 = jax.random.split(key, 4)
    x = jax.random.normal(kx, (N, C, H, W), dtype=jnp.float32)
    fc_w = jax.random.normal(kw1, (C, C, 1, 1), dtype=jnp.float32) * 0.3   # Conv2d(c1, c1, 1) weight
    fc_b = jax.random.normal(kb1, (C,), dtype=jnp.float32) * 0.1           # Conv2d(c1, c1, 1) bias
    sp_w = jax.random.normal(kw2, (1, 2, K, K), dtype=jnp.float32) * 0.2   # Conv2d(2, 1, 7) weight

    out = jax.block_until_ready(cbam_pallas(x, fc_w, fc_b, sp_w))

    ref = cbam_reference(x, fc_w, fc_b, sp_w)
    assert out.shape == ref.shape and out.dtype == ref.dtype
    err = float(jnp.max(jnp.abs(out - ref)))
    assert jnp.allclose(out, ref, rtol=1e-4, atol=1e-4), f"max abs err {err}"
    print("KERNEL_OK")
</pallas_src>

<mosaic_0001>
module attributes {stable_mosaic.version = 11 : i64} {
  func.func @kernel(%arg0: i32, %arg1: memref<1x4x256xf32, #tpu.memory_space<vmem>>, %arg2: memref<4x4xf32, #tpu.memory_space<vmem>>, %arg3: memref<1x4xf32, #tpu.memory_space<vmem>>, %arg4: memref<2x256x256xf32, #tpu.memory_space<vmem>>, %arg5: memref<1x4x256xf32, #tpu.memory_space<vmem>>) attributes {dimension_semantics = [#tpu.dimension_semantics<parallel>], iteration_bounds = array<i64: 2>, scalar_prefetch = 0 : i64, scratch_operands = 0 : i64, tpu.core_type = #tpu.core_type<tc>, window_params = [{transform_indices = @transform_0, window_bounds = array<i64: 1, 4, 256>}, {pipeline_mode = #tpu.pipeline_mode<synchronous>, transform_indices = @transform_1, window_bounds = array<i64: 4, 4>}, {pipeline_mode = #tpu.pipeline_mode<synchronous>, transform_indices = @transform_2, window_bounds = array<i64: 1, 4>}, {pipeline_mode = #tpu.pipeline_mode<synchronous>, transform_indices = @transform_3, window_bounds = array<i64: 2, 256, 256>}, {transform_indices = @transform_4, window_bounds = array<i64: 1, 4, 256>}]} {
    %c0 = arith.constant 0 : index
    %c0_0 = arith.constant 0 : index
    %c0_1 = arith.constant 0 : index
    %0 = vector.load %arg1[%c0, %c0_0, %c0_1] : memref<1x4x256xf32, #tpu.memory_space<vmem>>, vector<1x4x256xf32>
    %cst = arith.constant dense<0.000000e+00> : vector<1x4xf32>
    %1 = vector.multi_reduction <add>, %0, %cst [2] : vector<1x4x256xf32> to vector<1x4xf32>
    %cst_2 = arith.constant 3.906250e-03 : f32
    %2 = vector.broadcast %cst_2 : f32 to vector<1x4xf32>
    %3 = arith.mulf %1, %2 : vector<1x4xf32>
    %c0_3 = arith.constant 0 : index
    %c0_4 = arith.constant 0 : index
    %4 = vector.load %arg2[%c0_3, %c0_4] : memref<4x4xf32, #tpu.memory_space<vmem>>, vector<4x4xf32>
    %cst_5 = arith.constant dense<0.000000e+00> : vector<1x4xf32>
    %5 = tpu.matmul %3, %4, %cst_5 {dimension_numbers = #tpu.dot_dimension_numbers<[1], [0], [0], [1], [0, 0, 1, 1], [], []>} : vector<1x4xf32>, vector<4x4xf32>, vector<1x4xf32> -> vector<1x4xf32>
    %c0_6 = arith.constant 0 : index
    %c0_7 = arith.constant 0 : index
    %6 = vector.load %arg3[%c0_6, %c0_7] : memref<1x4xf32, #tpu.memory_space<vmem>>, vector<1x4xf32>
    %7 = arith.addf %5, %6 : vector<1x4xf32>
    %8 = arith.negf %7 : vector<1x4xf32>
    %9 = math.exp %8 : vector<1x4xf32>
    %cst_8 = arith.constant 1.000000e+00 : f32
    %10 = vector.broadcast %cst_8 : f32 to vector<1x4xf32>
    %11 = arith.addf %10, %9 : vector<1x4xf32>
    %12 = arith.divf %10, %11 : vector<1x4xf32>
    %13 = vector.shape_cast %12 : vector<1x4xf32> to vector<1x4x1xf32>
    %14 = vector.broadcast %13 : vector<1x4x1xf32> to vector<1x4x256xf32>
    %15 = arith.mulf %0, %14 : vector<1x4x256xf32>
    %cst_9 = arith.constant dense<0.000000e+00> : vector<1x256xf32>
    %16 = vector.multi_reduction <add>, %15, %cst_9 [1] : vector<1x4x256xf32> to vector<1x256xf32>
    %cst_10 = arith.constant 2.500000e-01 : f32
    %17 = vector.broadcast %cst_10 : f32 to vector<1x256xf32>
    %18 = arith.mulf %16, %17 : vector<1x256xf32>
    %cst_11 = arith.constant dense<0xFF800000> : vector<1x256xf32>
    %19 = vector.multi_reduction <maximumf>, %15, %cst_11 [1] : vector<1x4x256xf32> to vector<1x256xf32>
    %c0_12 = arith.constant 0 : index
    %c0_13 = arith.constant 0 : index
    %c0_14 = arith.constant 0 : index
    %20 = vector.load %arg4[%c0_12, %c0_13, %c0_14] : memref<2x256x256xf32, #tpu.memory_space<vmem>>, vector<1x256x256xf32>
    %21 = vector.shape_cast %20 : vector<1x256x256xf32> to vector<256x256xf32>
    %cst_15 = arith.constant dense<0.000000e+00> : vector<1x256xf32>
    %22 = tpu.matmul %18, %21, %cst_15 {dimension_numbers = #tpu.dot_dimension_numbers<[1], [0], [0], [1], [0, 0, 1, 1], [], []>} : vector<1x256xf32>, vector<256x256xf32>, vector<1x256xf32> -> vector<1x256xf32>
    %c1 = arith.constant 1 : index
    %c0_16 = arith.constant 0 : index
    %c0_17 = arith.constant 0 : index
    %23 = vector.load %arg4[%c1, %c0_16, %c0_17] : memref<2x256x256xf32, #tpu.memory_space<vmem>>, vector<1x256x256xf32>
    %24 = vector.shape_cast %23 : vector<1x256x256xf32> to vector<256x256xf32>
    %cst_18 = arith.constant dense<0.000000e+00> : vector<1x256xf32>
    %25 = tpu.matmul %19, %24, %cst_18 {dimension_numbers = #tpu.dot_dimension_numbers<[1], [0], [0], [1], [0, 0, 1, 1], [], []>} : vector<1x256xf32>, vector<256x256xf32>, vector<1x256xf32> -> vector<1x256xf32>
    %26 = arith.addf %22, %25 : vector<1x256xf32>
    %27 = arith.negf %26 : vector<1x256xf32>
    %28 = math.exp %27 : vector<1x256xf32>
    %cst_19 = arith.constant 1.000000e+00 : f32
    %29 = vector.broadcast %cst_19 : f32 to vector<1x256xf32>
    %30 = arith.addf %29, %28 : vector<1x256xf32>
    %31 = arith.divf %29, %30 : vector<1x256xf32>
    %32 = vector.shape_cast %31 : vector<1x256xf32> to vector<1x1x256xf32>
    %33 = vector.broadcast %32 : vector<1x1x256xf32> to vector<1x4x256xf32>
    %34 = arith.mulf %15, %33 : vector<1x4x256xf32>
    %c0_20 = arith.constant 0 : index
    %c0_21 = arith.constant 0 : index
    %c0_22 = arith.constant 0 : index
    %35 = vector.load %arg5[%c0_20, %c0_21, %c0_22] : memref<1x4x256xf32, #tpu.memory_space<vmem>>, vector<1x4x256xf32>
    tpu.vector_store %arg5[%c0_20, %c0_21, %c0_22], %34 {strides = array<i32>} : memref<1x4x256xf32, #tpu.memory_space<vmem>>, vector<1x4x256xf32>,
    return
  }
  func.func @transform_0(%arg0: i32) -> (i32, i32, i32) {
    %c0_i32 = arith.constant 0 : i32
    %c0_i32_0 = arith.constant 0 : i32
    %c0_i32_1 = arith.constant 0 : i32
    return %arg0, %c0_i32, %c0_i32_0 : i32, i32, i32
  }
  func.func @transform_1(%arg0: i32) -> (i32, i32) {
    %c0_i32 = arith.constant 0 : i32
    %c0_i32_0 = arith.constant 0 : i32
    %c0_i32_1 = arith.constant 0 : i32
    return %c0_i32, %c0_i32_0 : i32, i32
  }
  func.func @transform_2(%arg0: i32) -> (i32, i32) {
    %c0_i32 = arith.constant 0 : i32
    %c0_i32_0 = arith.constant 0 : i32
    %c0_i32_1 = arith.constant 0 : i32
    return %c0_i32, %c0_i32_0 : i32, i32
  }
  func.func @transform_3(%arg0: i32) -> (i32, i32, i32) {
    %c0_i32 = arith.constant 0 : i32
    %c0_i32_0 = arith.constant 0 : i32
    %c0_i32_1 = arith.constant 0 : i32
    %c0_i32_2 = arith.constant 0 : i32
    return %c0_i32, %c0_i32_0, %c0_i32_1 : i32, i32, i32
  }
  func.func @transform_4(%arg0: i32) -> (i32, i32, i32) {
    %c0_i32 = arith.constant 0 : i32
    %c0_i32_0 = arith.constant 0 : i32
    %c0_i32_1 = arith.constant 0 : i32
    return %arg0, %c0_i32, %c0_i32_0 : i32, i32, i32
  }
}

</mosaic_0001>

<llo_original>
// kernel: tpu_custom_call.1
$region0: #{tpu_custom_call.1}
  #allocation0 [shape = 'u32[]', space=smem, size = 0x4, offset = 0x4, fixed_abs, tag = 'smem constant byte address 0x4 - core index']
  #allocation1 [shape = 'u32[72,128]{1,0:T(1,128)}', space=vmem, size = 0x9000, scoped, tag = 'internal scratch']
  %s0 = inlined_call_operand.hbm [shape: f32[2,4,256], index: 0, kind: input, shape index: {}]
  %s1 = inlined_call_operand.hbm [shape: f32[4,4], index: 1, kind: input, shape index: {}]
  %s2 = inlined_call_operand.vmem [shape: f32[1,4], index: 2, kind: input, shape index: {}]
  %s3 = inlined_call_operand.hbm [shape: f32[2,256,256], index: 3, kind: input, shape index: {}]
  %s4 = inlined_call_operand.hbm [shape: f32[2,4,256], index: 4, kind: output, shape index: {}]
  %s5 = sld [smem:[#allocation0]]
  $region61: #{tpu_custom_call.1} parent=0
    _
  %s7 = ssub.s32 1, %s5
  %s8 = scalar_select 0, %s7, %s5
  $region1: #{tpu_custom_call.1} parent=0
    #allocation2 [shape = 'u8[8192]{0}', space=vmem, size = 0x2000, scoped, tag = 'input window, operand 0']
    #allocation3 [shape = 's32[2]{0}', space=sflag, size = 0x8, scoped, tag = 'scoped memory for tpu_custom_call.1']
    #allocation4 [shape = 's32[2]{0}', space=sflag, size = 0x8, scoped, tag = 'scoped memory for tpu_custom_call.1']
    #allocation5 [shape = 'u8[2048]{0}', space=vmem, size = 0x800, scoped, tag = 'input window, operand 1, single buffered']
    #allocation6 [shape = 's32[1]{0}', space=sflag, size = 0x4, scoped, tag = 'scoped memory for tpu_custom_call.1']
    #allocation7 [shape = 'u8[524288]{0}', space=vmem, size = 0x80000, scoped, tag = 'input window, operand 3, single buffered']
    #allocation8 [shape = 'u8[8192]{0}', space=vmem, size = 0x2000, scoped, tag = 'output window, operand 0']
    %9 = vsyncpa [#allocation3], 0
    %s10 = scalar_lea.sflag [#allocation3], 1
    %11 = vsyncpa %s10, 0
    %12 = vsyncpa [#allocation6], 0
    %13 = vsyncpa [#allocation4], 0
    %s14 = scalar_lea.sflag [#allocation4], 1
    %15 = vsyncpa %s14, 0
    loop: start=0, step=1, limit=4
    $region2: #{tpu_custom_call.1} parent=1 // loop_pre_header
      _
    $region3: #{tpu_custom_call.1} parent=1 // loop_header
      %s17 = sphi 0, %s21
      %p18 = scmp.ge.s32.totalorder %s17, 4
      %s27 = sphi 0, %s29
      %s30 = sphi 0, %s27
      %s31 = sphi 0, %s30
      %s47 = sphi 0, %s31
      %s51 = sphi 0, %s51
      %s53 = sphi 0, %s51
      %s54 = sphi 0, %s53
      %s68 = sphi 0, %s54
      %s72 = sphi 0, %s72
      %s74 = sphi 0, %s72
      %s75 = sphi 0, %s74
      %s89 = sphi 0, %s75
      %s93 = sphi 0, %s93
      %s95 = sphi 0, %s93
      %s96 = sphi 0, %s95
      %s110 = sphi 0, %s96
      %s116 = sphi 0, %s118
      %s119 = sphi 0, %s116
      %s120 = sphi 0, %s119
      %s136 = sphi 0, %s120
    $region4: #{tpu_custom_call.1} parent=1 // loop_header_branch
      %20 = sbr.rel (%p18) target = $region8
    $region5: #{tpu_custom_call.1} parent=1 // loop_body
      %s22 = ssub.s32 %s17, 1
      %s23 = ssub.s32 %s17, 2
      %s24 = sadd.s32 %s17, 1
      %s25 = ssub.s32 %s17, %s24
      %p26 = scmp.eq.s32.totalorder %s25, 0
      %s28 = sadd.s32 %s27, 1
      %s29 = scalar_select %p26, %s27, %s28
      %p32 = pneg %p26
      %p33 = scmp.eq.s32.totalorder %s17, 1
      %p34 = por %p32, %p33
      %p35 = scmp.ne.s32.totalorder %s27, %s30
      %p36 = scmp.eq.s32.totalorder %s17, 0
      %p37 = por %p35, %p36
      %p38 = scmp.ne.s32.totalorder %s27, %s30
      %p39 = scmp.eq.s32.totalorder %s22, 1
      %p40 = por %p38, %p39
      %p41 = scmp.ne.s32.totalorder %s30, %s31
      %p42 = scmp.eq.s32.totalorder %s22, 0
      %p43 = por %p41, %p42
      %p44 = scmp.ne.s32.totalorder %s30, %s31
      %p45 = scmp.eq.s32.totalorder %s23, 1
      %p46 = por %p44, %p45
      %p48 = scmp.ne.s32.totalorder %s31, %s47
      %p49 = scmp.eq.s32.totalorder %s23, 0
      %p50 = por %p48, %p49
      %s52 = sadd.s32 %s51, 1
      %p55 = scmp.eq.s32.totalorder %s17, 1
      %p56 = scmp.ne.s32.totalorder %s51, %s53
      %p57 = scmp.eq.s32.totalorder %s17, 0
      %p58 = por %p56, %p57
      %p59 = scmp.ne.s32.totalorder %s51, %s53
      %p60 = scmp.eq.s32.totalorder %s22, 1
      %p61 = por %p59, %p60
      %p62 = scmp.ne.s32.totalorder %s53, %s54
      %p63 = scmp.eq.s32.totalorder %s22, 0
      %p64 = por %p62, %p63
      %p65 = scmp.ne.s32.totalorder %s53, %s54
      %p66 = scmp.eq.s32.totalorder %s23, 1
      %p67 = por %p65, %p66
      %p69 = scmp.ne.s32.totalorder %s54, %s68
      %p70 = scmp.eq.s32.totalorder %s23, 0
      %p71 = por %p69, %p70
      %s73 = sadd.s32 %s72, 1
      %p76 = scmp.eq.s32.totalorder %s17, 1
      %p77 = scmp.ne.s32.totalorder %s72, %s74
      %p78 = scmp.eq.s32.totalorder %s17, 0
      %p79 = por %p77, %p78
      %p80 = scmp.ne.s32.totalorder %s72, %s74
      %p81 = scmp.eq.s32.totalorder %s22, 1
      %p82 = por %p80, %p81
      %p83 = scmp.ne.s32.totalorder %s74, %s75
      %p84 = scmp.eq.s32.totalorder %s22, 0
      %p85 = por %p83, %p84
      %p86 = scmp.ne.s32.totalorder %s74, %s75
      %p87 = scmp.eq.s32.totalorder %s23, 1
      %p88 = por %p86, %p87
      %p90 = scmp.ne.s32.totalorder %s75, %s89
      %p91 = scmp.eq.s32.totalorder %s23, 0
      %p92 = por %p90, %p91
      %s94 = sadd.s32 %s93, 1
      %p97 = scmp.eq.s32.totalorder %s17, 1
      %p98 = scmp.ne.s32.totalorder %s93, %s95
      %p99 = scmp.eq.s32.totalorder %s17, 0
      %p100 = por %p98, %p99
      %p101 = scmp.ne.s32.totalorder %s93, %s95
      %p102 = scmp.eq.s32.totalorder %s22, 1
      %p103 = por %p101, %p102
      %p104 = scmp.ne.s32.totalorder %s95, %s96
      %p105 = scmp.eq.s32.totalorder %s22, 0
      %p106 = por %p104, %p105
      %p107 = scmp.ne.s32.totalorder %s95, %s96
      %p108 = scmp.eq.s32.totalorder %s23, 1
      %p109 = por %p107, %p108
      %p111 = scmp.ne.s32.totalorder %s96, %s110
      %p112 = scmp.eq.s32.totalorder %s23, 0
      %p113 = por %p111, %p112
      %s114 = ssub.s32 %s17, %s24
      %p115 = scmp.eq.s32.totalorder %s114, 0
      %s117 = sadd.s32 %s116, 1
      %s118 = scalar_select %p115, %s116, %s117
      %p121 = pneg %p115
      %p122 = scmp.eq.s32.totalorder %s17, 1
      %p123 = por %p121, %p122
      %p124 = scmp.ne.s32.totalorder %s116, %s119
      %p125 = scmp.eq.s32.totalorder %s17, 0
      %p126 = por %p124, %p125
      %p127 = scmp.ne.s32.totalorder %s116, %s119
      %p128 = scmp.eq.s32.totalorder %s22, 1
      %p129 = por %p127, %p128
      %p130 = scmp.ne.s32.totalorder %s119, %s120
      %p131 = scmp.eq.s32.totalorder %s22, 0
      %p132 = por %p130, %p131
      %p133 = scmp.ne.s32.totalorder %s119, %s120
      %p134 = scmp.eq.s32.totalorder %s23, 1
      %p135 = por %p133, %p134
      %p137 = scmp.ne.s32.totalorder %s120, %s136
      %p138 = scmp.eq.s32.totalorder %s23, 0
      %p139 = por %p137, %p138
      %p140 = scmp.le.s32.totalorder 1, %s17
      %p141 = scmp.lt.s32.totalorder %s17, 3
      %p142 = pnand %p140, %p141
      %p143 = pneg %p142
      // Predicated region
      $region9: #{tpu_custom_call.1} parent=5 // pred_check
        _
      $region10: #{tpu_custom_call.1} parent=5 // pred_check_branch
        %145 = sbr.rel (%p142) target = $region12
      $region11: #{tpu_custom_call.1} parent=5 // pred_region
        %s146 = ssub.s32 %s17, 1
        // Predicated region
        $region13: #{tpu_custom_call.1} parent=11 // pred_check
          %p147 = pneg %p64
        $region14: #{tpu_custom_call.1} parent=11 // pred_check_branch
          %149 = sbr.rel (%p147) target = $region16
        $region15: #{tpu_custom_call.1} parent=11 // pred_region
          %151 = vsyncadd [#allocation6], 0
          %s153 = sshll.u32 %s1, 4
          %s154 = int_to_ptr.hbm [resolvable:$true] %s153
          %s155 = sshll.u32 [#allocation5], 4
          %s156 = int_to_ptr.vmem [resolvable:$true] %s155
          %158 = dma.hbm_to_vmem [thread:$0]  %s154, 64, %s156, [#allocation6]
        $region16: #{tpu_custom_call.1} parent=11 // pred_fallthru
          _
        // Predicated region
        $region17: #{tpu_custom_call.1} parent=11 // pred_check
          %p159 = pneg %p85
        $region18: #{tpu_custom_call.1} parent=11 // pred_check_branch
          %161 = sbr.rel (%p159) target = $region20
        $region19: #{tpu_custom_call.1} parent=11 // pred_region
          _
        $region20: #{tpu_custom_call.1} parent=11 // pred_fallthru
          _
        // Predicated region
        $region21: #{tpu_custom_call.1} parent=11 // pred_check
          %p162 = pneg %p106
        $region22: #{tpu_custom_call.1} parent=11 // pred_check_branch
          %164 = sbr.rel (%p162) target = $region24
        $region23: #{tpu_custom_call.1} parent=11 // pred_region
          %166 = vsyncadd [#allocation6], 0
          %s167 = sshll.u32 %s3, 4
          %s168 = int_to_ptr.hbm [resolvable:$true] %s167
          %s169 = sshll.u32 [#allocation7], 4
          %s170 = int_to_ptr.vmem [resolvable:$true] %s169
          %175 = dma.hbm_to_vmem [thread:$0]  %s168, 16384, %s170, [#allocation6], 256, 256, 16
        $region24: #{tpu_custom_call.1} parent=11 // pred_fallthru
          _
      $region12: #{tpu_custom_call.1} parent=5 // pred_fallthru
        _
      %p176 = scmp.lt.s32.totalorder %s17, 2
      // Predicated region
      $region25: #{tpu_custom_call.1} parent=5 // pred_check
        %p177 = pneg %p176
      $region26: #{tpu_custom_call.1} parent=5 // pred_check_branch
        %179 = sbr.rel (%p177) target = $region28
      $region27: #{tpu_custom_call.1} parent=5 // pred_region
        // Predicated region
        $region29: #{tpu_custom_call.1} parent=27 // pred_check
          %p180 = pneg %p37
        $region30: #{tpu_custom_call.1} parent=27 // pred_check_branch
          %182 = sbr.rel (%p180) target = $region32
        $region31: #{tpu_custom_call.1} parent=27 // pred_region
          %s183 = sand.u32 %s27, 1
          %s184 = scalar_lea.sflag [#allocation3], %s183
          %s185 = sand.u32 %s27, 1
          %s186 = smul.addr %s185, 8
          %s187 = scalar_lea.vmem [#allocation2], %s186
          %189 = vsyncadd %s184, 0
          %s190 = smul.addr %s17, 2
          %s191 = smul.addr %s190, 4
          %s192 = scalar_lea.hbm %s0, %s191
          %s194 = sshll.u32 %s192, 4
          %s195 = int_to_ptr.hbm [resolvable:$true] %s194
          %s196 = sshll.u32 %s187, 4
          %s197 = int_to_ptr.vmem [resolvable:$true] %s196
          %199 = dma.hbm_to_vmem [thread:$0]  %s195, 128, %s197, %s184
        $region32: #{tpu_custom_call.1} parent=27 // pred_fallthru
          _
      $region28: #{tpu_custom_call.1} parent=5 // pred_fallthru
        _
      %p200 = scmp.le.s32.totalorder 1, %s17
      %p201 = scmp.lt.s32.totalorder %s17, 3
      %p202 = pnand %p200, %p201
      %p203 = pneg %p202
      // Predicated region
      $region33: #{tpu_custom_call.1} parent=5 // pred_check
        _
      $region34: #{tpu_custom_call.1} parent=5 // pred_check_branch
        %205 = sbr.rel (%p202) target = $region36
      $region35: #{tpu_custom_call.1} parent=5 // pred_region
        %s206 = ssub.s32 %s17, 1
        %s207 = sand.u32 %s30, 1
        %s208 = scalar_lea.sflag [#allocation3], %s207
        %s209 = sand.u32 %s30, 1
        %s210 = smul.addr %s209, 8
        %s211 = scalar_lea.vmem [#allocation2], %s210
        // Predicated region
        $region37: #{tpu_custom_call.1} parent=35 // pred_check
          %p212 = pneg %p43
        $region38: #{tpu_custom_call.1} parent=35 // pred_check_branch
          %214 = sbr.rel (%p212) target = $region40
        $region39: #{tpu_custom_call.1} parent=35 // pred_region
          %216 = dma.done %s208, 128
        $region40: #{tpu_custom_call.1} parent=35 // pred_fallthru
          _
        // Predicated region
        $region41: #{tpu_custom_call.1} parent=35 // pred_check
          %p217 = pneg %p64
        $region42: #{tpu_custom_call.1} parent=35 // pred_check_branch
          %219 = sbr.rel (%p217) target = $region44
        $region43: #{tpu_custom_call.1} parent=35 // pred_region
          %221 = dma.done [#allocation6], 64
        $region44: #{tpu_custom_call.1} parent=35 // pred_fallthru
          _
        // Predicated region
        $region45: #{tpu_custom_call.1} parent=35 // pred_check
          %p222 = pneg %p106
        $region46: #{tpu_custom_call.1} parent=35 // pred_check_branch
          %224 = sbr.rel (%p222) target = $region48
        $region47: #{tpu_custom_call.1} parent=35 // pred_region
          %226 = dma.done [#allocation6], 16384
        $region48: #{tpu_custom_call.1} parent=35 // pred_fallthru
          _
        %s227 = sand.u32 %s30, 1
        %s228 = scalar_lea.sflag [#allocation3], %s227
        %s229 = sand.u32 %s30, 1
        %s230 = smul.addr %s229, 8
        %s231 = scalar_lea.vmem [#allocation2], %s230
        %p232 = pneg %p43
        %p233 = pneg %p40
        %p234 = pneg %p64
        %p235 = pneg %p61
        %p236 = pneg %p85
        %p237 = pneg %p82
        %p238 = pneg %p106
        %p239 = pneg %p103
        %p240 = pneg %p132
        %p241 = pneg %p129
        %s242 = sand.u32 %s119, 1
        %s243 = scalar_lea.sflag [#allocation4], %s242
        %s244 = sand.u32 %s119, 1
        %s245 = smul.addr %s244, 8
        %s246 = scalar_lea.vmem [#allocation8], %s245
        %v247 = vld [vmem:[%s211] sm:$0xff]
        %249 = vst [vmem:[#allocation1] ss:$2 sm:$0xff] %v247
        %v250 = vld.sshfl [vmem:[#allocation1] sm:$0xff pattern:$0x75316420]
        %v251 = vld.sshfl [vmem:[#allocation1 + $0x8] sm:$0xff pattern:$0x75316420]
        %vm254 = vcmask 1043456
        %v255 = vsel %vm254, %v250, 0.0
        %v256 = vsel %vm254, %v251, 0.0
        %v257 = vadd.f32 %v255, %v256
        %258 = vadd.xlane.f32.xlu0 %v257
        %v259 = vpop.xlane.xlu0 %258
        %v260 = vmul.f32 %v259, 0.00390625
        %v261 = vld [vmem:[#allocation5] sm:$0xf]
        %v262 = vld [vmem:[%s2] sm:$0x1]
        %v264 = vlaneseq
        %v265 = vand.u32 %v264, 127
        %v266 = vperm.slane %v260, %v265
        %vm267 = vcmask 31744
        %v268 = vsel %vm267, %v266, 0
        %v271 = vsel %vm254, %v261, 0
        %273 = vmatpush.msra.mxu0 0.0
        %274 = vmatpush.msra.mxu0 0.0
        %275 = vmatpush.msra.mxu0 0.0
        %276 = vmatpush.msra.mxu0 0.0
        %277 = vmatpush.msra.mxu0 0.0
        %278 = vmatpush.msra.mxu0 0.0
        %279 = vmatpush.msra.mxu0 0.0
        %280 = vmatpush.msra.mxu0 0.0
        %281 = vmatpush.msra.mxu0 0.0
        %282 = vmatpush.msra.mxu0 0.0
        %283 = vmatpush.msra.mxu0 0.0
        %284 = vmatpush.msra.mxu0 0.0
        %285 = vmatpush.msra.mxu0 0.0
        %286 = vmatpush.msra.mxu0 0.0
        %287 = vmatpush.msra.mxu0 0.0
        %288 = vmatpush.msra.mxu0 %v271
        %289 = vmatmul.f32.gmra.mxu0 %v268
        %v290 = vpop.f32.mrf.mxu0
        %v291 = vadd.f32 %v262, %v290
        %292 = vdwg.mxu0
        %v293 = vxor.u32 %v291, 2147483648
        %v294 = vmul.f32 %v293, 1.442695
        %v295 = vpow.pop %v294
        %v296 = vadd.f32 %v295, 1.0
        %v297 = vrcp.pop %v296
        %v298 = vmul.f32 %v296, %v297
        %v299 = vsub.f32 1.0, %v298
        %v300 = vmul.f32 %v297, %v299
        %v301 = vadd.f32 %v297, %v300
        %vm302 = vweird.f32 %v296
        %vm303 = vweird.f32 %v297
        %vm304 = vmor %vm302, %vm303
        %v305 = vsel %vm304, %v297, %v301
        %v306 = vand.u32 2147483647, %v296
        %vm307 = vcmp.eq.f32.partialorder %v306, 8.507059e+37
        %v308 = vand.u32 %v296, 2147483648
        %v309 = vor.u32 1.1754944e-38, %v308
        %v310 = vsel %vm307, %v309, %v305
        %v311 = vmul.f32 1.0, %v310
        %v312 = vperm.slane %v311, 0
        %v313 = vlaneseq
        %v314 = vshrl.u32 %v313, 7
        %316 = vset.pattern.permute.xlu0 %v314
        %317 = vperm.xlu0 %316, %v312
        %v318 = vpop.permute.xlu0 %317
        %v321 = vunpack.c.l.s4 839922192
        %v322 = vunpack.c.0.s8 %v321
        %v323 = vperm.slane %v318, %v322
        %v325 = vmul.f32 %v247, %v323
        %327 = vst [vmem:[#allocation1] ss:$2 sm:$0xff] %v325
        %v328 = vld.sshfl [vmem:[#allocation1] sm:$0xff pattern:$0x75316420]
        %v329 = vld.sshfl [vmem:[#allocation1 + $0x8] sm:$0xff pattern:$0x75316420]
        %v332 = vsel %vm254, %v328, 0.0
        %v333 = vrot.slane %v332, 4
        %v334 = vadd.f32 %v332, %v333
        %v335 = vrot.slane %v334, 2
        %v336 = vadd.f32 %v334, %v335
        %v337 = vrot.slane %v336, 1
        %v338 = vadd.f32 %v336, %v337
        %v339 = vsel %vm254, %v329, 0.0
        %v340 = vrot.slane %v339, 4
        %v341 = vadd.f32 %v339, %v340
        %v342 = vrot.slane %v341, 2
        %v343 = vadd.f32 %v341, %v342
        %v344 = vrot.slane %v343, 1
        %v345 = vadd.f32 %v343, %v344
        %v346 = vmul.f32 %v338, 0.25
        %v347 = vmul.f32 %v345, 0.25
        %348 = vst [vmem:[#allocation1] ss:$2 sm:$0xff] %v325
        %v349 = vld.sshfl [vmem:[#allocation1] sm:$0xff pattern:$0x75316420]
        %v350 = vld.sshfl [vmem:[#allocation1 + $0x8] sm:$0xff pattern:$0x75316420]
        %v353 = vsel %vm254, %v349, -inf
        %v354 = vrot.slane %v353, 4
        %v355 = vmax.f32 %v353, %v354
        %v356 = vrot.slane %v355, 2
        %v357 = vmax.f32 %v355, %v356
        %v358 = vrot.slane %v357, 1
        %v359 = vmax.f32 %v357, %v358
        %v360 = vsel %vm254, %v350, -inf
        %v361 = vrot.slane %v360, 4
        %v362 = vmax.f32 %v360, %v361
        %v363 = vrot.slane %v362, 2
        %v364 = vmax.f32 %v362, %v363
        %v365 = vrot.slane %v364, 1
        %v366 = vmax.f32 %v364, %v365
        %v367 = vld [vmem:[#allocation7] sm:$0xff]
        %v368 = vld [vmem:[#allocation7 + $0x8] sm:$0xff]
        %v369 = vld [vmem:[#allocation7 + $0x10] sm:$0xff]
        %v370 = vld [vmem:[#allocation7 + $0x18] sm:$0xff]
        %v371 = vld [vmem:[#allocation7 + $0x20] sm:$0xff]
        %v372 = vld [vmem:[#allocation7 + $0x28] sm:$0xff]
        %v373 = vld [vmem:[#allocation7 + $0x30] sm:$0xff]
        %v374 = vld [vmem:[#allocation7 + $0x38] sm:$0xff]
        %v375 = vld [vmem:[#allocation7 + $0x40] sm:$0xff]
        %v376 = vld [vmem:[#allocation7 + $0x48] sm:$0xff]
        %v377 = vld [vmem:[#allocation7 + $0x50] sm:$0xff]
        %v378 = vld [vmem:[#allocation7 + $0x58] sm:$0xff]
        %v379 = vld [vmem:[#allocation7 + $0x60] sm:$0xff]
        %v380 = vld [vmem:[#allocation7 + $0x68] sm:$0xff]
        %v381 = vld [vmem:[#allocation7 + $0x70] sm:$0xff]
        %v382 = vld [vmem:[#allocation7 + $0x78] sm:$0xff]
        %v383 = vld [vmem:[#allocation7 + $0x80] sm:$0xff]
        %v384 = vld [vmem:[#allocation7 + $0x88] sm:$0xff]
        %v385 = vld [vmem:[#allocation7 + $0x90] sm:$0xff]
        %v386 = vld [vmem:[#allocation7 + $0x98] sm:$0xff]
        %v387 = vld [vmem:[#allocation7 + $0xa0] sm:$0xff]
        %v388 = vld [vmem:[#allocation7 + $0xa8] sm:$0xff]
        %v389 = vld [vmem:[#allocation7 + $0xb0] sm:$0xff]
        %v390 = vld [vmem:[#allocation7 + $0xb8] sm:$0xff]
        %v391 = vld [vmem:[#allocation7 + $0xc0] sm:$0xff]
        %v392 = vld [vmem:[#allocation7 + $0xc8] sm:$0xff]
        %v393 = vld [vmem:[#allocation7 + $0xd0] sm:$0xff]
        %v394 = vld [vmem:[#allocation7 + $0xd8] sm:$0xff]
        %v395 = vld [vmem:[#allocation7 + $0xe0] sm:$0xff]
        %v396 = vld [vmem:[#allocation7 + $0xe8] sm:$0xff]
        %v397 = vld [vmem:[#allocation7 + $0xf0] sm:$0xff]
        %v398 = vld [vmem:[#allocation7 + $0xf8] sm:$0xff]
        %v399 = vld [vmem:[#allocation7 + $0x100] sm:$0xff]
        %v400 = vld [vmem:[#allocation7 + $0x108] sm:$0xff]
        %v401 = vld [vmem:[#allocation7 + $0x110] sm:$0xff]
        %v402 = vld [vmem:[#allocation7 + $0x118] sm:$0xff]
        %v403 = vld [vmem:[#allocation7 + $0x120] sm:$0xff]
        %v404 = vld [vmem:[#allocation7 + $0x128] sm:$0xff]
        %v405 = vld [vmem:[#allocation7 + $0x130] sm:$0xff]
        %v406 = vld [vmem:[#allocation7 + $0x138] sm:$0xff]
        %v407 = vld [vmem:[#allocation7 + $0x140] sm:$0xff]
        %v408 = vld [vmem:[#allocation7 + $0x148] sm:$0xff]
        %v409 = vld [vmem:[#allocation7 + $0x150] sm:$0xff]
        %v410 = vld [vmem:[#allocation7 + $0x158] sm:$0xff]
        %v411 = vld [vmem:[#allocation7 + $0x160] sm:$0xff]
        %v412 = vld [vmem:[#allocation7 + $0x168] sm:$0xff]
        %v413 = vld [vmem:[#allocation7 + $0x170] sm:$0xff]
        %v414 = vld [vmem:[#allocation7 + $0x178] sm:$0xff]
        %v415 = vld [vmem:[#allocation7 + $0x180] sm:$0xff]
        %v416 = vld [vmem:[#allocation7 + $0x188] sm:$0xff]
        %v417 = vld [vmem:[#allocation7 + $0x190] sm:$0xff]
        %v418 = vld [vmem:[#allocation7 + $0x198] sm:$0xff]
        %v419 = vld [vmem:[#allocation7 + $0x1a0] sm:$0xff]
        %v420 = vld [vmem:[#allocation7 + $0x1a8] sm:$0xff]
        %v421 = vld [vmem:[#allocation7 + $0x1b0] sm:$0xff]
        %v422 = vld [vmem:[#allocation7 + $0x1b8] sm:$0xff]
        %v423 = vld [vmem:[#allocation7 + $0x1c0] sm:$0xff]
        %v424 = vld [vmem:[#allocation7 + $0x1c8] sm:$0xff]
        %v425 = vld [vmem:[#allocation7 + $0x1d0] sm:$0xff]
        %v426 = vld [vmem:[#allocation7 + $0x1d8] sm:$0xff]
        %v427 = vld [vmem:[#allocation7 + $0x1e0] sm:$0xff]
        %v428 = vld [vmem:[#allocation7 + $0x1e8] sm:$0xff]
        %v429 = vld [vmem:[#allocation7 + $0x1f0] sm:$0xff]
        %v430 = vld [vmem:[#allocation7 + $0x1f8] sm:$0xff]
        %s431 = scalar_lea.vmem [#allocation7], 512
        %v432 = vld [vmem:[%s431] sm:$0xff]
        %v433 = vld [vmem:[%s431 + $0x8] sm:$0xff]
        %v434 = vld [vmem:[%s431 + $0x10] sm:$0xff]
        %v435 = vld [vmem:[%s431 + $0x18] sm:$0xff]
        %v436 = vld [vmem:[%s431 + $0x20] sm:$0xff]
        %v437 = vld [vmem:[%s431 + $0x28] sm:$0xff]
        %v438 = vld [vmem:[%s431 + $0x30] sm:$0xff]
        %v439 = vld [vmem:[%s431 + $0x38] sm:$0xff]
        %v440 = vld [vmem:[%s431 + $0x40] sm:$0xff]
        %v441 = vld [vmem:[%s431 + $0x48] sm:$0xff]
        %v442 = vld [vmem:[%s431 + $0x50] sm:$0xff]
        %v443 = vld [vmem:[%s431 + $0x58] sm:$0xff]
        %v444 = vld [vmem:[%s431 + $0x60] sm:$0xff]
        %v445 = vld [vmem:[%s431 + $0x68] sm:$0xff]
        %v446 = vld [vmem:[%s431 + $0x70] sm:$0xff]
        %v447 = vld [vmem:[%s431 + $0x78] sm:$0xff]
        %v448 = vld [vmem:[%s431 + $0x80] sm:$0xff]
        %v449 = vld [vmem:[%s431 + $0x88] sm:$0xff]
        %v450 = vld [vmem:[%s431 + $0x90] sm:$0xff]
        %v451 = vld [vmem:[%s431 + $0x98] sm:$0xff]
        %v452 = vld [vmem:[%s431 + $0xa0] sm:$0xff]
        %v453 = vld [vmem:[%s431 + $0xa8] sm:$0xff]
        %v454 = vld [vmem:[%s431 + $0xb0] sm:$0xff]
        %v455 = vld [vmem:[%s431 + $0xb8] sm:$0xff]
        %v456 = vld [vmem:[%s431 + $0xc0] sm:$0xff]
        %v457 = vld [vmem:[%s431 + $0xc8] sm:$0xff]
        %v458 = vld [vmem:[%s431 + $0xd0] sm:$0xff]
        %v459 = vld [vmem:[%s431 + $0xd8] sm:$0xff]
        %v460 = vld [vmem:[%s431 + $0xe0] sm:$0xff]
        %v461 = vld [vmem:[%s431 + $0xe8] sm:$0xff]
        %v462 = vld [vmem:[%s431 + $0xf0] sm:$0xff]
        %v463 = vld [vmem:[%s431 + $0xf8] sm:$0xff]
        %v464 = vld [vmem:[%s431 + $0x100] sm:$0xff]
        %v465 = vld [vmem:[%s431 + $0x108] sm:$0xff]
        %v466 = vld [vmem:[%s431 + $0x110] sm:$0xff]
        %v467 = vld [vmem:[%s431 + $0x118] sm:$0xff]
        %v468 = vld [vmem:[%s431 + $0x120] sm:$0xff]
        %v469 = vld [vmem:[%s431 + $0x128] sm:$0xff]
        %v470 = vld [vmem:[%s431 + $0x130] sm:$0xff]
        %v471 = vld [vmem:[%s431 + $0x138] sm:$0xff]
        %v472 = vld [vmem:[%s431 + $0x140] sm:$0xff]
        %v473 = vld [vmem:[%s431 + $0x148] sm:$0xff]
        %v474 = vld [vmem:[%s431 + $0x150] sm:$0xff]
        %v475 = vld [vmem:[%s431 + $0x158] sm:$0xff]
        %v476 = vld [vmem:[%s431 + $0x160] sm:$0xff]
        %v477 = vld [vmem:[%s431 + $0x168] sm:$0xff]
        %v478 = vld [vmem:[%s431 + $0x170] sm:$0xff]
        %v479 = vld [vmem:[%s431 + $0x178] sm:$0xff]
        %v480 = vld [vmem:[%s431 + $0x180] sm:$0xff]
        %v481 = vld [vmem:[%s431 + $0x188] sm:$0xff]
        %v482 = vld [vmem:[%s431 + $0x190] sm:$0xff]
        %v483 = vld [vmem:[%s431 + $0x198] sm:$0xff]
        %v484 = vld [vmem:[%s431 + $0x1a0] sm:$0xff]
        %v485 = vld [vmem:[%s431 + $0x1a8] sm:$0xff]
        %v486 = vld [vmem:[%s431 + $0x1b0] sm:$0xff]
        %v487 = vld [vmem:[%s431 + $0x1b8] sm:$0xff]
        %v488 = vld [vmem:[%s431 + $0x1c0] sm:$0xff]
        %v489 = vld [vmem:[%s431 + $0x1c8] sm:$0xff]
        %v490 = vld [vmem:[%s431 + $0x1d0] sm:$0xff]
        %v491 = vld [vmem:[%s431 + $0x1d8] sm:$0xff]
        %v492 = vld [vmem:[%s431 + $0x1e0] sm:$0xff]
        %v493 = vld [vmem:[%s431 + $0x1e8] sm:$0xff]
        %v494 = vld [vmem:[%s431 + $0x1f0] sm:$0xff]
        %v495 = vld [vmem:[%s431 + $0x1f8] sm:$0xff]
        %496 = vmatpush.msra.mxu0 %v462
        %497 = vmatpush.msra.mxu0 %v460
        %498 = vmatpush.msra.mxu0 %v458
        %499 = vmatpush.msra.mxu0 %v456
        %500 = vmatpush.msra.mxu0 %v454
        %501 = vmatpush.msra.mxu0 %v452
        %502 = vmatpush.msra.mxu0 %v450
        %503 = vmatpush.msra.mxu0 %v448
        %504 = vmatpush.msra.mxu0 %v446
        %505 = vmatpush.msra.mxu0 %v444
        %506 = vmatpush.msra.mxu0 %v442
        %507 = vmatpush.msra.mxu0 %v440
        %508 = vmatpush.msra.mxu0 %v438
        %509 = vmatpush.msra.mxu0 %v436
        %510 = vmatpush.msra.mxu0 %v434
        %511 = vmatpush.msra.mxu0 %v432
        %512 = vmatmul.f32.gmra.mxu0 %v359
        %v513 = vpop.f32.mrf.mxu0
        %v514 = vadd.f32 0.0, %v513
        %515 = vdwg.mxu0
        %516 = vmatpush.msra.mxu0 %v494
        %517 = vmatpush.msra.mxu0 %v492
        %518 = vmatpush.msra.mxu0 %v490
        %519 = vmatpush.msra.mxu0 %v488
        %520 = vmatpush.msra.mxu0 %v486
        %521 = vmatpush.msra.mxu0 %v484
        %522 = vmatpush.msra.mxu0 %v482
        %523 = vmatpush.msra.mxu0 %v480
        %524 = vmatpush.msra.mxu0 %v478
        %525 = vmatpush.msra.mxu0 %v476
        %526 = vmatpush.msra.mxu0 %v474
        %527 = vmatpush.msra.mxu0 %v472
        %528 = vmatpush.msra.mxu0 %v470
        %529 = vmatpush.msra.mxu0 %v468
        %530 = vmatpush.msra.mxu0 %v466
        %531 = vmatpush.msra.mxu0 %v464
        %532 = vmatmul.f32.gmra.mxu0 %v366
        %v533 = vpop.f32.mrf.mxu0
        %v534 = vadd.f32 %v514, %v533
        %535 = vdwg.mxu0
        %536 = vmatpush.msra.mxu0 %v463
        %537 = vmatpush.msra.mxu0 %v461
        %538 = vmatpush.msra.mxu0 %v459
        %539 = vmatpush.msra.mxu0 %v457
        %540 = vmatpush.msra.mxu0 %v455
        %541 = vmatpush.msra.mxu0 %v453
        %542 = vmatpush.msra.mxu0 %v451
        %543 = vmatpush.msra.mxu0 %v449
        %544 = vmatpush.msra.mxu0 %v447
        %545 = vmatpush.msra.mxu0 %v445
        %546 = vmatpush.msra.mxu0 %v443
        %547 = vmatpush.msra.mxu0 %v441
        %548 = vmatpush.msra.mxu0 %v439
        %549 = vmatpush.msra.mxu0 %v437
        %550 = vmatpush.msra.mxu0 %v435
        %551 = vmatpush.msra.mxu0 %v433
        %552 = vmatmul.f32.gmra.mxu0 %v359
        %v553 = vpop.f32.mrf.mxu0
        %v554 = vadd.f32 0.0, %v553
        %555 = vdwg.mxu0
        %556 = vmatpush.msra.mxu0 %v495
        %557 = vmatpush.msra.mxu0 %v493
        %558 = vmatpush.msra.mxu0 %v491
        %559 = vmatpush.msra.mxu0 %v489
        %560 = vmatpush.msra.mxu0 %v487
        %561 = vmatpush.msra.mxu0 %v485
        %562 = vmatpush.msra.mxu0 %v483
        %563 = vmatpush.msra.mxu0 %v481
        %564 = vmatpush.msra.mxu0 %v479
        %565 = vmatpush.msra.mxu0 %v477
        %566 = vmatpush.msra.mxu0 %v475
        %567 = vmatpush.msra.mxu0 %v473
        %568 = vmatpush.msra.mxu0 %v471
        %569 = vmatpush.msra.mxu0 %v469
        %570 = vmatpush.msra.mxu0 %v467
        %571 = vmatpush.msra.mxu0 %v465
        %572 = vmatmul.f32.gmra.mxu0 %v366
        %v573 = vpop.f32.mrf.mxu0
        %v574 = vadd.f32 %v554, %v573
        %575 = vdwg.mxu0
        %576 = vmatpush.msra.mxu0 %v397
        %577 = vmatpush.msra.mxu0 %v395
        %578 = vmatpush.msra.mxu0 %v393
        %579 = vmatpush.msra.mxu0 %v391
        %580 = vmatpush.msra.mxu0 %v389
        %581 = vmatpush.msra.mxu0 %v387
        %582 = vmatpush.msra.mxu0 %v385
        %583 = vmatpush.msra.mxu0 %v383
        %584 = vmatpush.msra.mxu0 %v381
        %585 = vmatpush.msra.mxu0 %v379
        %586 = vmatpush.msra.mxu0 %v377
        %587 = vmatpush.msra.mxu0 %v375
        %588 = vmatpush.msra.mxu0 %v373
        %589 = vmatpush.msra.mxu0 %v371
        %590 = vmatpush.msra.mxu0 %v369
        %591 = vmatpush.msra.mxu0 %v367
        %592 = vmatmul.f32.gmra.mxu0 %v346
        %v593 = vpop.f32.mrf.mxu0
        %v594 = vadd.f32 %v534, %v593
        %595 = vdwg.mxu0
        %596 = vmatpush.msra.mxu0 %v429
        %597 = vmatpush.msra.mxu0 %v427
        %598 = vmatpush.msra.mxu0 %v425
        %599 = vmatpush.msra.mxu0 %v423
        %600 = vmatpush.msra.mxu0 %v421
        %601 = vmatpush.msra.mxu0 %v419
        %602 = vmatpush.msra.mxu0 %v417
        %603 = vmatpush.msra.mxu0 %v415
        %604 = vmatpush.msra.mxu0 %v413
        %605 = vmatpush.msra.mxu0 %v411
        %606 = vmatpush.msra.mxu0 %v409
        %607 = vmatpush.msra.mxu0 %v407
        %608 = vmatpush.msra.mxu0 %v405
        %609 = vmatpush.msra.mxu0 %v403
        %610 = vmatpush.msra.mxu0 %v401
        %611 = vmatpush.msra.mxu0 %v399
        %612 = vmatmul.f32.gmra.mxu0 %v347
        %v613 = vpop.f32.mrf.mxu0
        %v614 = vadd.f32 %v594, %v613
        %615 = vdwg.mxu0
        %616 = vmatpush.msra.mxu0 %v398
        %617 = vmatpush.msra.mxu0 %v396
        %618 = vmatpush.msra.mxu0 %v394
        %619 = vmatpush.msra.mxu0 %v392
        %620 = vmatpush.msra.mxu0 %v390
        %621 = vmatpush.msra.mxu0 %v388
        %622 = vmatpush.msra.mxu0 %v386
        %623 = vmatpush.msra.mxu0 %v384
        %624 = vmatpush.msra.mxu0 %v382
        %625 = vmatpush.msra.mxu0 %v380
        %626 = vmatpush.msra.mxu0 %v378
        %627 = vmatpush.msra.mxu0 %v376
        %628 = vmatpush.msra.mxu0 %v374
        %629 = vmatpush.msra.mxu0 %v372
        %630 = vmatpush.msra.mxu0 %v370
        %631 = vmatpush.msra.mxu0 %v368
        %632 = vmatmul.f32.gmra.mxu0 %v346
        %v633 = vpop.f32.mrf.mxu0
        %v634 = vadd.f32 %v574, %v633
        %635 = vdwg.mxu0
        %636 = vmatpush.msra.mxu0 %v430
        %637 = vmatpush.msra.mxu0 %v428
        %638 = vmatpush.msra.mxu0 %v426
        %639 = vmatpush.msra.mxu0 %v424
        %640 = vmatpush.msra.mxu0 %v422
        %641 = vmatpush.msra.mxu0 %v420
        %642 = vmatpush.msra.mxu0 %v418
        %643 = vmatpush.msra.mxu0 %v416
        %644 = vmatpush.msra.mxu0 %v414
        %645 = vmatpush.msra.mxu0 %v412
        %646 = vmatpush.msra.mxu0 %v410
        %647 = vmatpush.msra.mxu0 %v408
        %648 = vmatpush.msra.mxu0 %v406
        %649 = vmatpush.msra.mxu0 %v404
        %650 = vmatpush.msra.mxu0 %v402
        %651 = vmatpush.msra.mxu0 %v400
        %652 = vmatmul.f32.gmra.mxu0 %v347
        %v653 = vpop.f32.mrf.mxu0
        %v654 = vadd.f32 %v634, %v653
        %655 = vdwg.mxu0
        %v656 = vxor.u32 %v614, 2147483648
        %v657 = vxor.u32 %v654, 2147483648
        %v658 = vmul.f32 %v656, 1.442695
        %v659 = vpow.pop %v658
        %v660 = vmul.f32 %v657, 1.442695
        %v661 = vpow.pop %v660
        %v662 = vadd.f32 %v659, 1.0
        %v663 = vadd.f32 %v661, 1.0
        %v664 = vrcp.pop %v662
        %v665 = vmul.f32 %v662, %v664
        %v666 = vsub.f32 1.0, %v665
        %v667 = vmul.f32 %v664, %v666
        %v668 = vadd.f32 %v664, %v667
        %vm669 = vweird.f32 %v662
        %vm670 = vweird.f32 %v664
        %vm671 = vmor %vm669, %vm670
        %v672 = vsel %vm671, %v664, %v668
        %v673 = vand.u32 2147483647, %v662
        %vm674 = vcmp.eq.f32.partialorder %v673, 8.507059e+37
        %v675 = vand.u32 %v662, 2147483648
        %v676 = vor.u32 1.1754944e-38, %v675
        %v677 = vsel %vm674, %v676, %v672
        %v678 = vmul.f32 1.0, %v677
        %v679 = vrcp.pop %v663
        %v680 = vmul.f32 %v663, %v679
        %v681 = vsub.f32 1.0, %v680
        %v682 = vmul.f32 %v679, %v681
        %v683 = vadd.f32 %v679, %v682
        %vm684 = vweird.f32 %v663
        %vm685 = vweird.f32 %v679
        %vm686 = vmor %vm684, %vm685
        %v687 = vsel %vm686, %v679, %v683
        %v688 = vand.u32 2147483647, %v663
        %vm689 = vcmp.eq.f32.partialorder %v688, 8.507059e+37
        %v690 = vand.u32 %v663, 2147483648
        %v691 = vor.u32 1.1754944e-38, %v690
        %v692 = vsel %vm689, %v691, %v687
        %v693 = vmul.f32 1.0, %v692
        %v694 = vperm.slane %v678, 0
        %v695 = vperm.slane %v693, 0
        %v698 = vrot.slane %v695, 4
        %v699 = vsel %vm254, %v694, %v698
        %v701 = vmul.f32 %v325, %v699
        %702 = vst [vmem:[%s246] sm:$0xff] %v701
        %s703 = sand.u32 %s119, 1
        %s704 = scalar_lea.sflag [#allocation4], %s703
        %s705 = sand.u32 %s119, 1
        %s706 = smul.addr %s705, 8
        %s707 = scalar_lea.vmem [#allocation8], %s706
        // Predicated region
        $region49: #{tpu_custom_call.1} parent=35 // pred_check
          %p708 = pneg %p129
        $region50: #{tpu_custom_call.1} parent=35 // pred_check_branch
          %710 = sbr.rel (%p708) target = $region52
        $region51: #{tpu_custom_call.1} parent=35 // pred_region
          %712 = vsyncadd %s704, 0
          %s713 = smul.addr %s22, 2
          %s714 = smul.addr %s713, 4
          %s715 = scalar_lea.hbm %s4, %s714
          %s717 = sshll.u32 %s707, 4
          %s718 = int_to_ptr.vmem [resolvable:$true] %s717
          %s719 = sshll.u32 %s715, 4
          %s720 = int_to_ptr.hbm [resolvable:$true] %s719
          %722 = dma.vmem_to_hbm [thread:$0]  %s718, 128, %s720, %s704
        $region52: #{tpu_custom_call.1} parent=35 // pred_fallthru
          _
      $region36: #{tpu_custom_call.1} parent=5 // pred_fallthru
        _
      %p723 = scmp.le.s32.totalorder 2, %s17
      // Predicated region
      $region53: #{tpu_custom_call.1} parent=5 // pred_check
        %p724 = pneg %p723
      $region54: #{tpu_custom_call.1} parent=5 // pred_check_branch
        %726 = sbr.rel (%p724) target = $region56
      $region55: #{tpu_custom_call.1} parent=5 // pred_region
        %s727 = ssub.s32 %s17, 2
        // Predicated region
        $region57: #{tpu_custom_call.1} parent=55 // pred_check
          %p728 = pneg %p135
        $region58: #{tpu_custom_call.1} parent=55 // pred_check_branch
          %730 = sbr.rel (%p728) target = $region60
        $region59: #{tpu_custom_call.1} parent=55 // pred_region
          %s731 = sand.u32 %s120, 1
          %s732 = scalar_lea.sflag [#allocation4], %s731
          %s733 = sand.u32 %s120, 1
          %s734 = smul.addr %s733, 8
          %s735 = scalar_lea.vmem [#allocation8], %s734
          %737 = dma.done %s732, 128
        $region60: #{tpu_custom_call.1} parent=55 // pred_fallthru
          _
      $region56: #{tpu_custom_call.1} parent=5 // pred_fallthru
        _
    $region6: #{tpu_custom_call.1} parent=1 // loop_footer
      %s21 = sadd.s32 1, %s17
    $region7: #{tpu_custom_call.1} parent=1 // loop_footer_branch
      %16 = sbr.rel target = $region3
    $region8: #{tpu_custom_call.1} parent=1 // loop_exit
      _
    %738 = vsyncpa [#allocation3], 1
    %s739 = scalar_lea.sflag [#allocation3], 1
    %740 = vsyncpa %s739, 1
    %741 = vsyncpa [#allocation6], 1
    %742 = vsyncpa [#allocation4], 1
    %s743 = scalar_lea.sflag [#allocation4], 1
    %744 = vsyncpa %s743, 1

</llo_original>
